<compile_context>
chip_gen: v6e
topology: v6e:2x2x1
jax: 0.10.0
libtpu: 0.0.40
codegen_flags: <defaults>
</compile_context>

<pallas_src>
import functools

import jax
import jax.numpy as jnp
from jax.experimental import pallas as pl
from jax.experimental.pallas import tpu as pltpu


def _ffn_kernel(x_ref, w1_ref, b1_ref, w2_ref, b2_ref, *rest,
                apply_dropout, keep_threshold, inv_keep):
    # x_ref:  (TN, D) tile of flattened input rows
    # w1_ref: (D, D)  lr1 weight (transposed to in x out)
    # b1_ref: (1, D)  lr1 bias
    # w2_ref: (D, D)  lr2 weight (transposed)
    # b2_ref: (1, D)  lr2 bias
    # rest:   (bits_ref, o_ref) in training mode, (o_ref,) otherwise
    if apply_dropout:
        bits_ref, o_ref = rest
    else:
        (o_ref,) = rest

    x = x_ref[...]

    # lr1 + ReLU (MXU matmul, f32 accumulation; operands stay in native dtype)
    h = jnp.dot(x, w1_ref[...], preferred_element_type=jnp.float32)
    h = h + b1_ref[...].astype(jnp.float32)
    h = jnp.maximum(h, 0.0)

    # lr2
    y = jnp.dot(h.astype(w2_ref.dtype), w2_ref[...],
                preferred_element_type=jnp.float32)
    y = y + b2_ref[...].astype(jnp.float32)

    if apply_dropout:
        # Integer-domain dropout: drop iff bits < round(p * 2^32).
        bits = bits_ref[...]
        keep = bits >= jnp.uint32(keep_threshold)
        y = jnp.where(keep, y * inv_keep, 0.0)

    o_ref[...] = y.astype(o_ref.dtype)


def _pick_tile_n(n, max_tile=1024):
    """Largest row tile <= max_tile that divides n (multiple of 8, or n itself)."""
    if n <= max_tile:
        return n
    t = (max_tile // 8) * 8
    while t >= 8:
        if n % t == 0:
            return t
        t -= 8
    return n  # fallback: single block covering all rows


def ffn_forward(x, w1, b1, w2, b2, *, key=None, dropout_rate=0.2,
                training=False, tile_n=None):
    """x: (batch, seq, D).  w1/w2: (D, D) in PyTorch (out, in) layout.  b1/b2: (D,)."""
    B, S, D = x.shape
    N = B * S
    if tile_n is None:
        tile_n = _pick_tile_n(N)
    assert N % tile_n == 0, "flattened row count must be divisible by tile_n"

    x2 = x.reshape(N, D)
    # PyTorch Linear: y = x @ W.T + b  -> pre-transpose once in the wrapper.
    w1_t = jnp.asarray(w1).T
    w2_t = jnp.asarray(w2).T
    b1_2d = jnp.asarray(b1).reshape(1, D)
    b2_2d = jnp.asarray(b2).reshape(1, D)

    apply_dropout = bool(training) and dropout_rate > 0.0

    inputs = [x2, w1_t, b1_2d, w2_t, b2_2d]
    in_specs = [
        pl.BlockSpec((tile_n, D), lambda i: (i, 0)),  # x rows
        pl.BlockSpec((D, D), lambda i: (0, 0)),       # w1 (resident across grid)
        pl.BlockSpec((1, D), lambda i: (0, 0)),       # b1
        pl.BlockSpec((D, D), lambda i: (0, 0)),       # w2
        pl.BlockSpec((1, D), lambda i: (0, 0)),       # b2
    ]

    if apply_dropout:
        if key is None:
            key = jax.random.PRNGKey(0)
        # Portable RNG: bits generated by XLA, thresholded inside the kernel.
        # TODO(synk): on real TPU this could use pltpu.prng_random_bits to avoid
        # the extra (N, D) uint32 HBM stream, but that primitive has no
        # interpret/CPU lowering.
        bits = jax.random.bits(key, (N, D), dtype=jnp.uint32)
        inputs.append(bits)
        in_specs.append(pl.BlockSpec((tile_n, D), lambda i: (i, 0)))
        keep_threshold = min(int(round(dropout_rate * (2.0 ** 32))), 2 ** 32 - 1)
        inv_keep = 1.0 / (1.0 - dropout_rate)
    else:
        keep_threshold = 0
        inv_keep = 1.0

    kernel = functools.partial(_ffn_kernel,
                               apply_dropout=apply_dropout,
                               keep_threshold=keep_threshold,
                               inv_keep=inv_keep)

    grid = (N // tile_n,)
    out = pl.pallas_call(
        kernel,
        out_shape=jax.ShapeDtypeStruct((N, D), x.dtype),
        grid=grid,
        in_specs=in_specs,
        out_specs=pl.BlockSpec((tile_n, D), lambda i: (i, 0)),
        compiler_params=pltpu.CompilerParams(
            dimension_semantics=("parallel",)),
    )(*inputs)

    return out.reshape(B, S, D)


if __name__ == "__main__":
    # Small, module-consistent shapes: FFN acts on the last (state_size) dim.
    B, S, D = 2, 8, 32

    key = jax.random.PRNGKey(0)
    kx, k1, k2, k3, k4, kdrop = jax.random.split(key, 6)

    x = jax.random.normal(kx, (B, S, D), dtype=jnp.float32)

    # Deterministic params (PyTorch Linear layout: weight (out, in), bias (out,))
    bound = 1.0 / (D ** 0.5)
    w1 = jax.random.uniform(k1, (D, D), jnp.float32, -bound, bound)
    b1 = jax.random.uniform(k2, (D,), jnp.float32, -bound, bound)
    w2 = jax.random.uniform(k3, (D, D), jnp.float32, -bound, bound)
    b2 = jax.random.uniform(k4, (D,), jnp.float32, -bound, bound)

    # Eval-mode forward (dropout is identity, matching model.eval()).
    y = ffn_forward(x, w1, b1, w2, b2, training=False)
    jax.block_until_ready(y)

    # Plain-JAX reference for the eval path.
    ref = (jnp.maximum(x.reshape(-1, D) @ w1.T + b1, 0.0) @ w2.T + b2).reshape(B, S, D)
    assert jnp.allclose(y, ref, atol=1e-5, rtol=1e-5)

    # Train-mode forward exercises the in-kernel dropout path.
    p = 0.2
    y_train = ffn_forward(x, w1, b1, w2, b2, key=kdrop, dropout_rate=p,
                          training=True)
    jax.block_until_ready(y_train)

    # Sanity: dropped fraction is near p, kept values equal ref / (1 - p).
    frac_dropped = float(jnp.mean((y_train == 0.0).astype(jnp.float32)))
    assert 0.05 < frac_dropped < 0.40, frac_dropped
    expected_kept = ref / (1.0 - p)
    ok = jnp.where(y_train != 0.0,
                   jnp.abs(y_train - expected_kept) < 1e-4, True)
    assert bool(jnp.all(ok))

    print("KERNEL_OK")
</pallas_src>

<mosaic_0001>
module attributes {stable_mosaic.version = 11 : i64} {
  func.func @_ffn_kernel(%arg0: i32, %arg1: memref<16x32xf32, #tpu.memory_space<vmem>>, %arg2: memref<32x32xf32, #tpu.memory_space<vmem>>, %arg3: memref<1x32xf32, #tpu.memory_space<vmem>>, %arg4: memref<32x32xf32, #tpu.memory_space<vmem>>, %arg5: memref<1x32xf32, #tpu.memory_space<vmem>>, %arg6: memref<16x32xf32, #tpu.memory_space<vmem>>) attributes {dimension_semantics = [#tpu.dimension_semantics<parallel>], iteration_bounds = array<i64: 1>, scalar_prefetch = 0 : i64, scratch_operands = 0 : i64, tpu.core_type = #tpu.core_type<tc>, window_params = [{transform_indices = @transform_0, window_bounds = array<i64: 16, 32>}, {pipeline_mode = #tpu.pipeline_mode<synchronous>, transform_indices = @transform_1, window_bounds = array<i64: 32, 32>}, {pipeline_mode = #tpu.pipeline_mode<synchronous>, transform_indices = @transform_2, window_bounds = array<i64: 1, 32>}, {pipeline_mode = #tpu.pipeline_mode<synchronous>, transform_indices = @transform_3, window_bounds = array<i64: 32, 32>}, {pipeline_mode = #tpu.pipeline_mode<synchronous>, transform_indices = @transform_4, window_bounds = array<i64: 1, 32>}, {transform_indices = @transform_5, window_bounds = array<i64: 16, 32>}]} {
    %c0 = arith.constant 0 : index
    %c0_0 = arith.constant 0 : index
    %0 = vector.load %arg1[%c0, %c0_0] : memref<16x32xf32, #tpu.memory_space<vmem>>, vector<16x32xf32>
    %c0_1 = arith.constant 0 : index
    %c0_2 = arith.constant 0 : index
    %1 = vector.load %arg2[%c0_1, %c0_2] : memref<32x32xf32, #tpu.memory_space<vmem>>, vector<32x32xf32>
    %cst = arith.constant dense<0.000000e+00> : vector<16x32xf32>
    %2 = tpu.matmul %0, %1, %cst {dimension_numbers = #tpu.dot_dimension_numbers<[1], [0], [0], [1], [0, 0, 1, 1], [], []>} : vector<16x32xf32>, vector<32x32xf32>, vector<16x32xf32> -> vector<16x32xf32>
    %c0_3 = arith.constant 0 : index
    %c0_4 = arith.constant 0 : index
    %3 = vector.load %arg3[%c0_3, %c0_4] : memref<1x32xf32, #tpu.memory_space<vmem>>, vector<1x32xf32>
    %4 = vector.broadcast %3 : vector<1x32xf32> to vector<16x32xf32>
    %5 = arith.addf %2, %4 : vector<16x32xf32>
    %cst_5 = arith.constant 0.000000e+00 : f32
    %6 = vector.broadcast %cst_5 : f32 to vector<16x32xf32>
    %7 = arith.maximumf %5, %6 : vector<16x32xf32>
    %c0_6 = arith.constant 0 : index
    %c0_7 = arith.constant 0 : index
    %8 = vector.load %arg4[%c0_6, %c0_7] : memref<32x32xf32, #tpu.memory_space<vmem>>, vector<32x32xf32>
    %cst_8 = arith.constant dense<0.000000e+00> : vector<16x32xf32>
    %9 = tpu.matmul %7, %8, %cst_8 {dimension_numbers = #tpu.dot_dimension_numbers<[1], [0], [0], [1], [0, 0, 1, 1], [], []>} : vector<16x32xf32>, vector<32x32xf32>, vector<16x32xf32> -> vector<16x32xf32>
    %c0_9 = arith.constant 0 : index
    %c0_10 = arith.constant 0 : index
    %10 = vector.load %arg5[%c0_9, %c0_10] : memref<1x32xf32, #tpu.memory_space<vmem>>, vector<1x32xf32>
    %11 = vector.broadcast %10 : vector<1x32xf32> to vector<16x32xf32>
    %12 = arith.addf %9, %11 : vector<16x32xf32>
    %c0_11 = arith.constant 0 : index
    %c0_12 = arith.constant 0 : index
    %13 = vector.load %arg6[%c0_11, %c0_12] : memref<16x32xf32, #tpu.memory_space<vmem>>, vector<16x32xf32>
    tpu.vector_store %arg6[%c0_11, %c0_12], %12 {strides = array<i32>} : memref<16x32xf32, #tpu.memory_space<vmem>>, vector<16x32xf32>,
    return
  }
  func.func @transform_0(%arg0: i32) -> (i32, i32) {
    %c0_i32 = arith.constant 0 : i32
    %c0_i32_0 = arith.constant 0 : i32
    return %arg0, %c0_i32 : i32, i32
  }
  func.func @transform_1(%arg0: i32) -> (i32, i32) {
    %c0_i32 = arith.constant 0 : i32
    %c0_i32_0 = arith.constant 0 : i32
    %c0_i32_1 = arith.constant 0 : i32
    return %c0_i32, %c0_i32_0 : i32, i32
  }
  func.func @transform_2(%arg0: i32) -> (i32, i32) {
    %c0_i32 = arith.constant 0 : i32
    %c0_i32_0 = arith.constant 0 : i32
    %c0_i32_1 = arith.constant 0 : i32
    return %c0_i32, %c0_i32_0 : i32, i32
  }
  func.func @transform_3(%arg0: i32) -> (i32, i32) {
    %c0_i32 = arith.constant 0 : i32
    %c0_i32_0 = arith.constant 0 : i32
    %c0_i32_1 = arith.constant 0 : i32
    return %c0_i32, %c0_i32_0 : i32, i32
  }
  func.func @transform_4(%arg0: i32) -> (i32, i32) {
    %c0_i32 = arith.constant 0 : i32
    %c0_i32_0 = arith.constant 0 : i32
    %c0_i32_1 = arith.constant 0 : i32
    return %c0_i32, %c0_i32_0 : i32, i32
  }
  func.func @transform_5(%arg0: i32) -> (i32, i32) {
    %c0_i32 = arith.constant 0 : i32
    %c0_i32_0 = arith.constant 0 : i32
    return %arg0, %c0_i32 : i32, i32
  }
}

</mosaic_0001>

<llo_original>
// kernel: tpu_custom_call.1
$region0: #{tpu_custom_call.1}
  #allocation0 [shape = 'u32[]', space=smem, size = 0x4, offset = 0x4, fixed_abs, tag = 'smem constant byte address 0x4 - core index']
  #allocation1 [shape = 'u32[144,128]{1,0:T(1,128)}', space=vmem, size = 0x12000, scoped, tag = 'internal scratch']
  %s0 = inlined_call_operand.hbm [shape: f32[16,32], index: 0, kind: input, shape index: {}]
  %s1 = inlined_call_operand.hbm [shape: f32[32,32], index: 1, kind: input, shape index: {}]
  %s2 = inlined_call_operand.vmem [shape: f32[1,32], index: 2, kind: input, shape index: {}]
  %s3 = inlined_call_operand.hbm [shape: f32[32,32], index: 3, kind: input, shape index: {}]
  %s4 = inlined_call_operand.vmem [shape: f32[1,32], index: 4, kind: input, shape index: {}]
  %s5 = inlined_call_operand.hbm [shape: f32[16,32], index: 5, kind: output, shape index: {}]
  %s6 = sld [smem:[#allocation0]]
  $region42: #{tpu_custom_call.1} parent=0
    _
  %s8 = ssub.s32 1, %s6
  %s9 = scalar_select 0, %s8, %s6
  $region1: #{tpu_custom_call.1} parent=0
    #allocation2 [shape = 'u8[8192]{0}', space=vmem, size = 0x2000, scoped, tag = 'input window, operand 0, single buffered']
    #allocation3 [shape = 's32[1]{0}', space=sflag, size = 0x4, scoped, tag = 'scoped memory for tpu_custom_call.1']
    #allocation4 [shape = 's32[1]{0}', space=sflag, size = 0x4, scoped, tag = 'scoped memory for tpu_custom_call.1']
    #allocation5 [shape = 'u8[16384]{0}', space=vmem, size = 0x4000, scoped, tag = 'input window, operand 1, single buffered']
    #allocation6 [shape = 's32[1]{0}', space=sflag, size = 0x4, scoped, tag = 'scoped memory for tpu_custom_call.1']
    #allocation7 [shape = 'u8[16384]{0}', space=vmem, size = 0x4000, scoped, tag = 'input window, operand 3, single buffered']
    #allocation8 [shape = 'u8[8192]{0}', space=vmem, size = 0x2000, scoped, tag = 'output window, operand 0, single buffered']
    %10 = vsyncpa [#allocation3], 0
    %11 = vsyncpa [#allocation6], 0
    %12 = vsyncpa [#allocation4], 0
    // Predicated region
    $region2: #{tpu_custom_call.1} parent=1 // pred_check
      _
    $region3: #{tpu_custom_call.1} parent=1 // pred_check_branch
      %14 = sbr.rel (0) target = $region5
    $region4: #{tpu_custom_call.1} parent=1 // pred_region
      %s16 = ssub.s32 256, 256
      %17 = vsyncadd [#allocation3], %s16
      %s18 = sshll.u32 [#allocation2], 4
      %s19 = int_to_ptr.vmem [resolvable:$true] %s18
      %24 = dma.hbm_to_vmem [thread:$0]  %s0, 256, %s19, [#allocation3], 128, 128, 8
    $region5: #{tpu_custom_call.1} parent=1 // pred_fallthru
      _
    // Predicated region
    $region6: #{tpu_custom_call.1} parent=1 // pred_check
      _
    $region7: #{tpu_custom_call.1} parent=1 // pred_check_branch
      %26 = sbr.rel (0) target = $region9
    $region8: #{tpu_custom_call.1} parent=1 // pred_region
      %s28 = ssub.s32 512, 512
      %29 = vsyncadd [#allocation6], %s28
      %s30 = sshll.u32 [#allocation5], 4
      %s31 = int_to_ptr.vmem [resolvable:$true] %s30
      %36 = dma.hbm_to_vmem [thread:$0]  %s1, 512, %s31, [#allocation6], 128, 128, 8
    $region9: #{tpu_custom_call.1} parent=1 // pred_fallthru
      _
    // Predicated region
    $region10: #{tpu_custom_call.1} parent=1 // pred_check
      _
    $region11: #{tpu_custom_call.1} parent=1 // pred_check_branch
      %38 = sbr.rel (0) target = $region13
    $region12: #{tpu_custom_call.1} parent=1 // pred_region
      _
    $region13: #{tpu_custom_call.1} parent=1 // pred_fallthru
      _
    // Predicated region
    $region14: #{tpu_custom_call.1} parent=1 // pred_check
      _
    $region15: #{tpu_custom_call.1} parent=1 // pred_check_branch
      %40 = sbr.rel (0) target = $region17
    $region16: #{tpu_custom_call.1} parent=1 // pred_region
      %s42 = ssub.s32 512, 512
      %43 = vsyncadd [#allocation6], %s42
      %s44 = sshll.u32 [#allocation7], 4
      %s45 = int_to_ptr.vmem [resolvable:$true] %s44
      %50 = dma.hbm_to_vmem [thread:$0]  %s3, 512, %s45, [#allocation6], 128, 128, 8
    $region17: #{tpu_custom_call.1} parent=1 // pred_fallthru
      _
    // Predicated region
    $region18: #{tpu_custom_call.1} parent=1 // pred_check
      _
    $region19: #{tpu_custom_call.1} parent=1 // pred_check_branch
      %52 = sbr.rel (0) target = $region21
    $region20: #{tpu_custom_call.1} parent=1 // pred_region
      _
    $region21: #{tpu_custom_call.1} parent=1 // pred_fallthru
      _
    // Predicated region
    $region22: #{tpu_custom_call.1} parent=1 // pred_check
      _
    $region23: #{tpu_custom_call.1} parent=1 // pred_check_branch
      %54 = sbr.rel (0) target = $region25
    $region24: #{tpu_custom_call.1} parent=1 // pred_region
      %55 = dma.done [#allocation3], 256
    $region25: #{tpu_custom_call.1} parent=1 // pred_fallthru
      _
    // Predicated region
    $region26: #{tpu_custom_call.1} parent=1 // pred_check
      _
    $region27: #{tpu_custom_call.1} parent=1 // pred_check_branch
      %57 = sbr.rel (0) target = $region29
    $region28: #{tpu_custom_call.1} parent=1 // pred_region
      %58 = dma.done [#allocation6], 512
    $region29: #{tpu_custom_call.1} parent=1 // pred_fallthru
      _
    // Predicated region
    $region30: #{tpu_custom_call.1} parent=1 // pred_check
      _
    $region31: #{tpu_custom_call.1} parent=1 // pred_check_branch
      %60 = sbr.rel (0) target = $region33
    $region32: #{tpu_custom_call.1} parent=1 // pred_region
      %61 = dma.done [#allocation6], 512
    $region33: #{tpu_custom_call.1} parent=1 // pred_fallthru
      _
    %v62 = vld [vmem:[#allocation2] sm:$0xff]
    %v63 = vld [vmem:[#allocation2 + $0x8] sm:$0xff]
    %v64 = vld [vmem:[#allocation5] sm:$0xff]
    %v65 = vld [vmem:[#allocation5 + $0x8] sm:$0xff]
    %v66 = vld [vmem:[#allocation5 + $0x10] sm:$0xff]
    %v67 = vld [vmem:[#allocation5 + $0x18] sm:$0xff]
    %v68 = vld [vmem:[%s2] sm:$0x1]
    %v70 = vlaneseq
    %v71 = vshrl.u32 %v70, 7
    %v72 = vsub.s32 0, %v71
    %v73 = vrot.slane %v68, %v72
    %vm75 = vcmask 261120
    %v77 = vsel %vm75, %v62, 0
    %v80 = vsel %vm75, %v63, 0
    %82 = vmatprep.subr.mxu0 0.0
    %83 = vmatpush1.msra.mxu0 0.0
    %84 = vmatprep.subr.mxu0 0.0
    %85 = vmatpush1.msra.mxu0 0.0
    %86 = vmatprep.subr.mxu0 0.0
    %87 = vmatpush1.msra.mxu0 0.0
    %88 = vmatprep.subr.mxu0 0.0
    %89 = vmatpush1.msra.mxu0 0.0
    %90 = vmatprep.subr.mxu0 0.0
    %91 = vmatpush1.msra.mxu0 0.0
    %92 = vmatprep.subr.mxu0 0.0
    %93 = vmatpush1.msra.mxu0 0.0
    %94 = vmatprep.subr.mxu0 0.0
    %95 = vmatpush1.msra.mxu0 0.0
    %96 = vmatprep.subr.mxu0 0.0
    %97 = vmatpush1.msra.mxu0 0.0
    %98 = vmatprep.subr.mxu0 0.0
    %99 = vmatpush1.msra.mxu0 0.0
    %100 = vmatprep.subr.mxu0 0.0
    %101 = vmatpush1.msra.mxu0 0.0
    %102 = vmatprep.subr.mxu0 0.0
    %103 = vmatpush1.msra.mxu0 0.0
    %104 = vmatprep.subr.mxu0 0.0
    %105 = vmatpush1.msra.mxu0 0.0
    %106 = vmatprep.subr.mxu0 0.0
    %107 = vmatpush1.msra.mxu0 %v67
    %108 = vmatprep.subr.mxu0 0.0
    %109 = vmatpush1.msra.mxu0 %v66
    %110 = vmatprep.subr.mxu0 0.0
    %111 = vmatpush1.msra.mxu0 %v65
    %112 = vmatprep.subr.mxu0 0.0
    %113 = vmatpush1.msra.mxu0 %v64
    %114 = vmatprep.subr.mxu0 0.0
    %115 = vmatpush2.msra.mxu0 0.0
    %116 = vmatprep.subr.mxu0 0.0
    %117 = vmatpush2.msra.mxu0 0.0
    %118 = vmatprep.subr.mxu0 0.0
    %119 = vmatpush2.msra.mxu0 0.0
    %120 = vmatprep.subr.mxu0 0.0
    %121 = vmatpush2.msra.mxu0 0.0
    %122 = vmatprep.subr.mxu0 0.0
    %123 = vmatpush2.msra.mxu0 0.0
    %124 = vmatprep.subr.mxu0 0.0
    %125 = vmatpush2.msra.mxu0 0.0
    %126 = vmatprep.subr.mxu0 0.0
    %127 = vmatpush2.msra.mxu0 0.0
    %128 = vmatprep.subr.mxu0 0.0
    %129 = vmatpush2.msra.mxu0 0.0
    %130 = vmatprep.subr.mxu0 0.0
    %131 = vmatpush2.msra.mxu0 0.0
    %132 = vmatprep.subr.mxu0 0.0
    %133 = vmatpush2.msra.mxu0 0.0
    %134 = vmatprep.subr.mxu0 0.0
    %135 = vmatpush2.msra.mxu0 0.0
    %136 = vmatprep.subr.mxu0 0.0
    %137 = vmatpush2.msra.mxu0 0.0
    %138 = vmatprep.subr.mxu0 0.0
    %139 = vmatpush2.msra.mxu0 0.0
    %140 = vmatprep.subr.mxu0 0.0
    %141 = vmatpush2.msra.mxu0 0.0
    %142 = vmatprep.subr.mxu0 0.0
    %143 = vmatpush2.msra.mxu0 0.0
    %144 = vmatprep.subr.mxu0 0.0
    %145 = vmatpush2.msra.mxu0 0.0
    %146 = vmatprep.mubr.f32.mxu0 0.0
    %147 = vmatmul.mubr.f32.gmra.mxu0 %v77
    %v148 = vpop.f32.mrf.mxu0
    %v149 = vadd.f32 %v73, %v148
    %v150 = vpop.f32.mrf.mxu0
    %151 = vmatprep.mubr.f32.mxu0 0.0
    %152 = vmatmul.mubr.f32.gmra.mxu0 %v80
    %v153 = vpop.f32.mrf.mxu0
    %v154 = vadd.f32 %v73, %v153
    %v155 = vpop.f32.mrf.mxu0
    %156 = vdwg.mxu0
    %v157 = vmax.f32 %v149, 0.0
    %v158 = vmax.f32 %v154, 0.0
    %v159 = vld [vmem:[#allocation7] sm:$0xff]
    %v160 = vld [vmem:[#allocation7 + $0x8] sm:$0xff]
    %v161 = vld [vmem:[#allocation7 + $0x10] sm:$0xff]
    %v162 = vld [vmem:[#allocation7 + $0x18] sm:$0xff]
    %v163 = vld [vmem:[%s4] sm:$0x1]
    %v165 = vlaneseq
    %v166 = vshrl.u32 %v165, 7
    %v167 = vsub.s32 0, %v166
    %v168 = vrot.slane %v163, %v167
    %v171 = vsel %vm75, %v157, 0
    %v174 = vsel %vm75, %v158, 0
    %176 = vmatprep.subr.mxu0 0.0
    %177 = vmatpush1.msra.mxu0 0.0
    %178 = vmatprep.subr.mxu0 0.0
    %179 = vmatpush1.msra.mxu0 0.0
    %180 = vmatprep.subr.mxu0 0.0
    %181 = vmatpush1.msra.mxu0 0.0
    %182 = vmatprep.subr.mxu0 0.0
    %183 = vmatpush1.msra.mxu0 0.0
    %184 = vmatprep.subr.mxu0 0.0
    %185 = vmatpush1.msra.mxu0 0.0
    %186 = vmatprep.subr.mxu0 0.0
    %187 = vmatpush1.msra.mxu0 0.0
    %188 = vmatprep.subr.mxu0 0.0
    %189 = vmatpush1.msra.mxu0 0.0
    %190 = vmatprep.subr.mxu0 0.0
    %191 = vmatpush1.msra.mxu0 0.0
    %192 = vmatprep.subr.mxu0 0.0
    %193 = vmatpush1.msra.mxu0 0.0
    %194 = vmatprep.subr.mxu0 0.0
    %195 = vmatpush1.msra.mxu0 0.0
    %196 = vmatprep.subr.mxu0 0.0
    %197 = vmatpush1.msra.mxu0 0.0
    %198 = vmatprep.subr.mxu0 0.0
    %199 = vmatpush1.msra.mxu0 0.0
    %200 = vmatprep.subr.mxu0 0.0
    %201 = vmatpush1.msra.mxu0 %v162
    %202 = vmatprep.subr.mxu0 0.0
    %203 = vmatpush1.msra.mxu0 %v161
    %204 = vmatprep.subr.mxu0 0.0
    %205 = vmatpush1.msra.mxu0 %v160
    %206 = vmatprep.subr.mxu0 0.0
    %207 = vmatpush1.msra.mxu0 %v159
    %208 = vmatprep.subr.mxu0 0.0
    %209 = vmatpush2.msra.mxu0 0.0
    %210 = vmatprep.subr.mxu0 0.0
    %211 = vmatpush2.msra.mxu0 0.0
    %212 = vmatprep.subr.mxu0 0.0
    %213 = vmatpush2.msra.mxu0 0.0
    %214 = vmatprep.subr.mxu0 0.0
    %215 = vmatpush2.msra.mxu0 0.0
    %216 = vmatprep.subr.mxu0 0.0
    %217 = vmatpush2.msra.mxu0 0.0
    %218 = vmatprep.subr.mxu0 0.0
    %219 = vmatpush2.msra.mxu0 0.0
    %220 = vmatprep.subr.mxu0 0.0
    %221 = vmatpush2.msra.mxu0 0.0
    %222 = vmatprep.subr.mxu0 0.0
    %223 = vmatpush2.msra.mxu0 0.0
    %224 = vmatprep.subr.mxu0 0.0
    %225 = vmatpush2.msra.mxu0 0.0
    %226 = vmatprep.subr.mxu0 0.0
    %227 = vmatpush2.msra.mxu0 0.0
    %228 = vmatprep.subr.mxu0 0.0
    %229 = vmatpush2.msra.mxu0 0.0
    %230 = vmatprep.subr.mxu0 0.0
    %231 = vmatpush2.msra.mxu0 0.0
    %232 = vmatprep.subr.mxu0 0.0
    %233 = vmatpush2.msra.mxu0 0.0
    %234 = vmatprep.subr.mxu0 0.0
    %235 = vmatpush2.msra.mxu0 0.0
    %236 = vmatprep.subr.mxu0 0.0
    %237 = vmatpush2.msra.mxu0 0.0
    %238 = vmatprep.subr.mxu0 0.0
    %239 = vmatpush2.msra.mxu0 0.0
    %240 = vmatprep.mubr.f32.mxu0 0.0
    %241 = vmatmul.mubr.f32.gmra.mxu0 %v171
    %v242 = vpop.f32.mrf.mxu0
    %v243 = vadd.f32 %v168, %v242
    %v244 = vpop.f32.mrf.mxu0
    %245 = vmatprep.mubr.f32.mxu0 0.0
    %246 = vmatmul.mubr.f32.gmra.mxu0 %v174
    %v247 = vpop.f32.mrf.mxu0
    %v248 = vadd.f32 %v168, %v247
    %v249 = vpop.f32.mrf.mxu0
    %250 = vdwg.mxu0
    %251 = vst.msk [vmem:[#allocation8] sm:$0xff] %vm75, %v243
    %252 = vst.msk [vmem:[#allocation8 + $0x8] sm:$0xff] %vm75, %v248
    // Predicated region
    $region34: #{tpu_custom_call.1} parent=1 // pred_check
      _
    $region35: #{tpu_custom_call.1} parent=1 // pred_check_branch
      %254 = sbr.rel (0) target = $region37
    $region36: #{tpu_custom_call.1} parent=1 // pred_region
      %s256 = ssub.s32 256, 256
      %257 = vsyncadd [#allocation4], %s256
      %s258 = sshll.u32 [#allocation8], 4
      %s259 = int_to_ptr.vmem [resolvable:$true] %s258
      %264 = dma.vmem_to_hbm [thread:$0]  %s259, 256, %s5, [#allocation4], 128, 128, 8
    $region37: #{tpu_custom_call.1} parent=1 // pred_fallthru
      _
    // Predicated region
    $region38: #{tpu_custom_call.1} parent=1 // pred_check
      _
    $region39: #{tpu_custom_call.1} parent=1 // pred_check_branch
      %266 = sbr.rel (0) target = $region41
    $region40: #{tpu_custom_call.1} parent=1 // pred_region
      %267 = dma.done [#allocation4], 256
    $region41: #{tpu_custom_call.1} parent=1 // pred_fallthru
      _
    %268 = vsyncpa [#allocation3], 1
    %269 = vsyncpa [#allocation6], 1
    %270 = vsyncpa [#allocation4], 1

</llo_original>
